<compile_context>
chip_gen: v7x
topology: tpu7x:2x2x1
jax: 0.10.0
libtpu: 0.0.40
codegen_flags: <defaults>
</compile_context>

<pallas_src>
import functools

import jax
import jax.numpy as jnp
from jax import lax
from jax.experimental import pallas as pl
from jax.experimental.pallas import tpu as pltpu


# ---------------------------------------------------------------------------
# Kernel A: Conv1d('same') + ELU + per-row BatchNorm partial statistics.
# ---------------------------------------------------------------------------
def _conv_elu_stats_kernel(K, Cin, L, chunk,
                           xp_ref, w2_ref, b_ref,
                           y_ref, s_ref, ss_ref,
                           xcol_ref):
    # xp_ref   : (1, Cin, L + K - 1)  'same'-padded input row (resident)
    # w2_ref   : (Cout, K * Cin)      weights reordered for the fused matmul
    # b_ref    : (Cout, 1)            conv bias
    # y_ref    : (1, Cout, L)         conv + ELU output row (lane-dense)
    # s_ref    : (1, Cout, 1)         per-row per-channel sum
    # ss_ref   : (1, Cout, 1)         per-row per-channel sum of squares
    # xcol_ref : (K*Cin, chunk)       VMEM scratch for the im2col panel
    Cout = w2_ref.shape[0]
    s_tot = jnp.zeros((Cout, 1), jnp.float32)
    ss_tot = jnp.zeros((Cout, 1), jnp.float32)

    for off in range(0, L, chunk):           # static chunk loop (python ints)
        clen = min(chunk, L - off)

        # Assemble im2col panel: row k*Cin + ci == xp[ci, off + k : off + k + clen].
        # Plain sub-slice stores into a VMEM scratch (no concatenation needed).
        for k in range(K):
            xcol_ref[k * Cin:(k + 1) * Cin, 0:clen] = \
                xp_ref[0, :, off + k: off + k + clen]

        xcol = xcol_ref[:, 0:clen]                                   # (K*Cin, clen)

        # Single fused MXU matmul, contraction depth K*Cin.
        yc = jnp.dot(w2_ref[...], xcol,
                     preferred_element_type=jnp.float32)             # (Cout, clen)
        yc = yc + b_ref[...]

        # ELU (alpha = 1).
        yc = jnp.where(yc > 0, yc, jnp.exp(yc) - 1.0)

        y_ref[0, :, off:off + clen] = yc

        s_tot = s_tot + jnp.sum(yc, axis=-1, keepdims=True)
        ss_tot = ss_tot + jnp.sum(yc * yc, axis=-1, keepdims=True)

    s_ref[0] = s_tot
    ss_ref[0] = ss_tot


# ---------------------------------------------------------------------------
# Kernel B: fused BatchNorm affine (scale/shift) + residual + MaxPool1d.
# ---------------------------------------------------------------------------
def _bn_pool_kernel(ds, pad_for_pool, Lp_used, chunk,
                    y_ref, sc_ref, sh_ref, s0_ref,
                    res_ref, pool_ref):
    # y_ref    : (1, Cout, L)          conv + ELU row
    # sc_ref   : (Cout, 1)             gamma * rsqrt(var + eps)
    # sh_ref   : (Cout, 1)             beta - mean * scale
    # s0_ref   : (chunk, chunk // ds)  one-hot column-selection matrix
    # res_ref  : (1, Cout, L)          residual output (BN result)
    # pool_ref : (1, Cout, Lo)         pooled output
    r = y_ref[0] * sc_ref[...] + sh_ref[...]          # (Cout, L)
    res_ref[0] = r

    C = r.shape[0]

    # Source sequence for pooling: optional ConstantPad1d(1, 0) (odd L), plus
    # ds-1 trailing zeros so every static shifted slice below stays in range
    # (those trailing columns are never selected by the one-hot extraction).
    pieces = []
    if pad_for_pool:
        pieces.append(jnp.zeros((C, 1), jnp.float32))
    pieces.append(r)
    rpad = (1 if pad_for_pool else 0) + (ds - 1)
    if rpad > 0:
        pieces.append(jnp.zeros((C, rpad), jnp.float32))
    rsrc = jnp.concatenate(pieces, axis=-1) if len(pieces) > 1 else r

    # Sliding-window max (window = ds) via static lane shifts.
    m = rsrc[:, 0:Lp_used]
    for j in range(1, ds):
        m = jnp.maximum(m, rsrc[:, j: j + Lp_used])

    # Extract every ds-th column (window starts) with an exact one-hot matmul.
    for off in range(0, Lp_used, chunk):              # static chunk loop
        clen = min(chunk, Lp_used - off)
        cLo = clen // ds
        sel = s0_ref[0:clen, 0:cLo]                   # sub-block is still valid
        pc = jnp.dot(m[:, off: off + clen], sel,
                     preferred_element_type=jnp.float32)             # (Cout, cLo)
        pool_ref[0, :, off // ds: off // ds + cLo] = pc


# ---------------------------------------------------------------------------
# Wrapper
# ---------------------------------------------------------------------------
def encoder_block_forward(x_ncl, w, b, gamma, beta, *, kernel_size=9, downsample=2):
    """x_ncl: (N, Cin, L) float32 (PyTorch NCL).  w: (Cout, Cin, K), b/gamma/beta: (Cout,).
       Returns (pooled (N, Cout, Lo), residual (N, Cout, L)) in NCL layout."""
    N, Cin, L = x_ncl.shape
    Cout = w.shape[0]
    K = int(kernel_size)
    ds = int(downsample)
    eps = 1e-5

    # PyTorch Conv1d(padding='same'): left = (K-1)//2, right = K-1-left.
    total_pad = K - 1
    left = total_pad // 2
    right = total_pad - left

    x = x_ncl.astype(jnp.float32)
    xp = jnp.pad(x, ((0, 0), (0, 0), (left, right)))              # (N, Cin, L+K-1)
    Lp_in = L + K - 1

    # Weights reordered to match the im2col row ordering (k-major, then ci).
    w2 = jnp.transpose(w.astype(jnp.float32), (0, 2, 1)).reshape(Cout, K * Cin)
    b2 = b.astype(jnp.float32).reshape(Cout, 1)

    chunk_a = min(L, 512)

    # --- Pass A: conv + ELU + partial BN stats -------------------------------
    kernel_a = functools.partial(_conv_elu_stats_kernel, K, Cin, L, chunk_a)
    y, sums, ssqs = pl.pallas_call(
        kernel_a,
        grid=(N,),
        in_specs=(
            pl.BlockSpec((1, Cin, Lp_in), lambda n: (n, 0, 0)),
            pl.BlockSpec((Cout, K * Cin), lambda n: (0, 0)),
            pl.BlockSpec((Cout, 1), lambda n: (0, 0)),
        ),
        out_specs=(
            pl.BlockSpec((1, Cout, L), lambda n: (n, 0, 0)),
            pl.BlockSpec((1, Cout, 1), lambda n: (n, 0, 0)),
            pl.BlockSpec((1, Cout, 1), lambda n: (n, 0, 0)),
        ),
        out_shape=(
            jax.ShapeDtypeStruct((N, Cout, L), jnp.float32),
            jax.ShapeDtypeStruct((N, Cout, 1), jnp.float32),
            jax.ShapeDtypeStruct((N, Cout, 1), jnp.float32),
        ),
        scratch_shapes=[pltpu.VMEM((K * Cin, chunk_a), jnp.float32)],
        compiler_params=pltpu.CompilerParams(
            dimension_semantics=("parallel",)),
    )(xp, w2, b2)

    # --- Tiny cross-batch BN combine (training mode, biased variance) --------
    cnt = jnp.float32(N * L)
    mean = jnp.sum(sums[:, :, 0], axis=0) / cnt                    # (Cout,)
    var = jnp.maximum(jnp.sum(ssqs[:, :, 0], axis=0) / cnt - mean * mean, 0.0)
    scale = gamma.astype(jnp.float32) * lax.rsqrt(var + eps)
    shift = beta.astype(jnp.float32) - mean * scale
    scale2 = scale.reshape(Cout, 1)
    shift2 = shift.reshape(Cout, 1)

    # --- Pooling geometry (PyTorch semantics) ---------------------------------
    pad_for_pool = bool(L % 2)
    Lp_pad = L + 2 if pad_for_pool else L
    Lo_total = Lp_pad // ds                    # MaxPool1d output length (truncation)
    Lp_used = Lo_total * ds                    # columns actually covered by windows

    chunk_b = min(Lp_used, 512)
    chunk_b -= chunk_b % ds
    chunk_b = max(chunk_b, ds)
    Loc = chunk_b // ds
    # One-hot selection matrix: column i picks padded position i*ds (exact copy).
    s0 = (jnp.arange(chunk_b)[:, None] ==
          (jnp.arange(Loc) * ds)[None, :]).astype(jnp.float32)

    # --- Pass B: BN affine + residual + maxpool -------------------------------
    kernel_b = functools.partial(_bn_pool_kernel, ds, pad_for_pool, Lp_used, chunk_b)
    residual, pooled = pl.pallas_call(
        kernel_b,
        grid=(N,),
        in_specs=(
            pl.BlockSpec((1, Cout, L), lambda n: (n, 0, 0)),
            pl.BlockSpec((Cout, 1), lambda n: (0, 0)),
            pl.BlockSpec((Cout, 1), lambda n: (0, 0)),
            pl.BlockSpec((chunk_b, Loc), lambda n: (0, 0)),
        ),
        out_specs=(
            pl.BlockSpec((1, Cout, L), lambda n: (n, 0, 0)),
            pl.BlockSpec((1, Cout, Lo_total), lambda n: (n, 0, 0)),
        ),
        out_shape=(
            jax.ShapeDtypeStruct((N, Cout, L), jnp.float32),
            jax.ShapeDtypeStruct((N, Cout, Lo_total), jnp.float32),
        ),
        compiler_params=pltpu.CompilerParams(
            dimension_semantics=("parallel",)),
    )(y, scale2, shift2, s0)

    return pooled, residual


# ---------------------------------------------------------------------------
# Pure-JAX reference (same semantics, NCL layout) for a sanity check.
# ---------------------------------------------------------------------------
def _reference(x_ncl, w, b, gamma, beta, kernel_size=9, downsample=2):
    N, Cin, L = x_ncl.shape
    Cout = w.shape[0]
    K = kernel_size
    ds = downsample
    total_pad = K - 1
    left = total_pad // 2
    right = total_pad - left
    xp = jnp.pad(x_ncl.astype(jnp.float32), ((0, 0), (0, 0), (left, right)))
    y = lax.conv_general_dilated(xp, w.astype(jnp.float32), window_strides=(1,),
                                 padding='VALID',
                                 dimension_numbers=('NCH', 'OIH', 'NCH'))
    y = y + b[None, :, None]
    y = jnp.where(y > 0, y, jnp.exp(y) - 1.0)
    mean = jnp.mean(y, axis=(0, 2), keepdims=True)
    var = jnp.mean((y - mean) ** 2, axis=(0, 2), keepdims=True)
    y = (y - mean) / jnp.sqrt(var + 1e-5)
    y = y * gamma[None, :, None] + beta[None, :, None]
    residual = y
    if L % 2:
        y = jnp.pad(y, ((0, 0), (0, 0), (1, 1)))
    Lo = (y.shape[-1] - ds) // ds + 1
    pooled = jnp.max(y[..., :Lo * ds].reshape(N, Cout, Lo, ds), axis=-1)
    return pooled, residual


if __name__ == "__main__":
    # Small shapes consistent with the module: batch=2, in_channels=4,
    # out_channels=8, kernel_size=9.
    N, Cin, Cout, K = 2, 4, 8, 9

    key = jax.random.PRNGKey(0)
    kx, kw, kb, kg, kbt = jax.random.split(key, 5)
    w = jax.random.normal(kw, (Cout, Cin, K), jnp.float32) * 0.1     # Conv1d weight
    b = jax.random.normal(kb, (Cout,), jnp.float32) * 0.1            # Conv1d bias
    gamma = 1.0 + 0.1 * jax.random.normal(kg, (Cout,), jnp.float32)  # BN weight
    beta = 0.1 * jax.random.normal(kbt, (Cout,), jnp.float32)        # BN bias

    # (L=16, ds=2): default; (L=16, ds=3): MaxPool truncation;
    # (L=15, ds=2): odd length -> ConstantPad1d(1, 0) before pooling.
    cases = [(16, 2), (16, 3), (15, 2)]
    for L, DS in cases:
        x = jax.random.normal(jax.random.fold_in(kx, L), (N, Cin, L), jnp.float32)

        pooled, residual = encoder_block_forward(x, w, b, gamma, beta,
                                                 kernel_size=K, downsample=DS)
        jax.block_until_ready((pooled, residual))

        ref_pooled, ref_residual = _reference(x, w, b, gamma, beta,
                                              kernel_size=K, downsample=DS)
        Lp = L + 2 if L % 2 else L
        assert pooled.shape == (N, Cout, Lp // DS), (pooled.shape, (N, Cout, Lp // DS))
        assert residual.shape == (N, Cout, L), residual.shape
        assert jnp.allclose(pooled, ref_pooled, atol=2e-3, rtol=2e-3)
        assert jnp.allclose(residual, ref_residual, atol=2e-3, rtol=2e-3)

    print("KERNEL_OK")
</pallas_src>

<mosaic_0001>
module attributes {stable_mosaic.version = 11 : i64} {
  func.func @_conv_elu_stats_kernel(%arg0: i32, %arg1: memref<1x4x24xf32, #tpu.memory_space<vmem>>, %arg2: memref<8x36xf32, #tpu.memory_space<vmem>>, %arg3: memref<8x1xf32, #tpu.memory_space<vmem>>, %arg4: memref<1x8x16xf32, #tpu.memory_space<vmem>>, %arg5: memref<1x8x1xf32, #tpu.memory_space<vmem>>, %arg6: memref<1x8x1xf32, #tpu.memory_space<vmem>>, %arg7: memref<36x16xf32, #tpu.memory_space<vmem>>) attributes {dimension_semantics = [#tpu.dimension_semantics<parallel>], iteration_bounds = array<i64: 2>, scalar_prefetch = 0 : i64, scratch_operands = 1 : i64, tpu.core_type = #tpu.core_type<tc>, window_params = [{transform_indices = @transform_0, window_bounds = array<i64: 1, 4, 24>}, {pipeline_mode = #tpu.pipeline_mode<synchronous>, transform_indices = @transform_1, window_bounds = array<i64: 8, 36>}, {pipeline_mode = #tpu.pipeline_mode<synchronous>, transform_indices = @transform_2, window_bounds = array<i64: 8, 1>}, {transform_indices = @transform_3, window_bounds = array<i64: 1, 8, 16>}, {transform_indices = @transform_4, window_bounds = array<i64: 1, 8, 1>}, {transform_indices = @transform_5, window_bounds = array<i64: 1, 8, 1>}]} {
    %cst = arith.constant 0.000000e+00 : f32
    %0 = vector.broadcast %cst : f32 to vector<8x1xf32>
    %cst_0 = arith.constant 0.000000e+00 : f32
    %1 = vector.broadcast %cst_0 : f32 to vector<8x1xf32>
    %c0 = arith.constant 0 : index
    %c0_1 = arith.constant 0 : index
    %c0_2 = arith.constant 0 : index
    %2 = vector.load %arg1[%c0, %c0_1, %c0_2] : memref<1x4x24xf32, #tpu.memory_space<vmem>>, vector<1x4x16xf32>
    %3 = vector.shape_cast %2 : vector<1x4x16xf32> to vector<4x16xf32>
    %c0_3 = arith.constant 0 : index
    %c0_4 = arith.constant 0 : index
    %4 = vector.load %arg7[%c0_3, %c0_4] : memref<36x16xf32, #tpu.memory_space<vmem>>, vector<4x16xf32>
    tpu.vector_store %arg7[%c0_3, %c0_4], %3 {strides = array<i32>} : memref<36x16xf32, #tpu.memory_space<vmem>>, vector<4x16xf32>,
    %c0_5 = arith.constant 0 : index
    %c0_6 = arith.constant 0 : index
    %c1 = arith.constant 1 : index
    %5 = vector.load %arg1[%c0_5, %c0_6, %c1] : memref<1x4x24xf32, #tpu.memory_space<vmem>>, vector<1x4x16xf32>
    %6 = vector.shape_cast %5 : vector<1x4x16xf32> to vector<4x16xf32>
    %c4 = arith.constant 4 : index
    %c0_7 = arith.constant 0 : index
    %7 = vector.load %arg7[%c4, %c0_7] : memref<36x16xf32, #tpu.memory_space<vmem>>, vector<4x16xf32>
    tpu.vector_store %arg7[%c4, %c0_7], %6 {strides = array<i32>} : memref<36x16xf32, #tpu.memory_space<vmem>>, vector<4x16xf32>,
    %c0_8 = arith.constant 0 : index
    %c0_9 = arith.constant 0 : index
    %c2 = arith.constant 2 : index
    %8 = vector.load %arg1[%c0_8, %c0_9, %c2] : memref<1x4x24xf32, #tpu.memory_space<vmem>>, vector<1x4x16xf32>
    %9 = vector.shape_cast %8 : vector<1x4x16xf32> to vector<4x16xf32>
    %c8 = arith.constant 8 : index
    %c0_10 = arith.constant 0 : index
    %10 = vector.load %arg7[%c8, %c0_10] : memref<36x16xf32, #tpu.memory_space<vmem>>, vector<4x16xf32>
    tpu.vector_store %arg7[%c8, %c0_10], %9 {strides = array<i32>} : memref<36x16xf32, #tpu.memory_space<vmem>>, vector<4x16xf32>,
    %c0_11 = arith.constant 0 : index
    %c0_12 = arith.constant 0 : index
    %c3 = arith.constant 3 : index
    %11 = vector.load %arg1[%c0_11, %c0_12, %c3] : memref<1x4x24xf32, #tpu.memory_space<vmem>>, vector<1x4x16xf32>
    %12 = vector.shape_cast %11 : vector<1x4x16xf32> to vector<4x16xf32>
    %c12 = arith.constant 12 : index
    %c0_13 = arith.constant 0 : index
    %13 = vector.load %arg7[%c12, %c0_13] : memref<36x16xf32, #tpu.memory_space<vmem>>, vector<4x16xf32>
    tpu.vector_store %arg7[%c12, %c0_13], %12 {strides = array<i32>} : memref<36x16xf32, #tpu.memory_space<vmem>>, vector<4x16xf32>,
    %c0_14 = arith.constant 0 : index
    %c0_15 = arith.constant 0 : index
    %c4_16 = arith.constant 4 : index
    %14 = vector.load %arg1[%c0_14, %c0_15, %c4_16] : memref<1x4x24xf32, #tpu.memory_space<vmem>>, vector<1x4x16xf32>
    %15 = vector.shape_cast %14 : vector<1x4x16xf32> to vector<4x16xf32>
    %c16 = arith.constant 16 : index
    %c0_17 = arith.constant 0 : index
    %16 = vector.load %arg7[%c16, %c0_17] : memref<36x16xf32, #tpu.memory_space<vmem>>, vector<4x16xf32>
    tpu.vector_store %arg7[%c16, %c0_17], %15 {strides = array<i32>} : memref<36x16xf32, #tpu.memory_space<vmem>>, vector<4x16xf32>,
    %c0_18 = arith.constant 0 : index
    %c0_19 = arith.constant 0 : index
    %c5 = arith.constant 5 : index
    %17 = vector.load %arg1[%c0_18, %c0_19, %c5] : memref<1x4x24xf32, #tpu.memory_space<vmem>>, vector<1x4x16xf32>
    %18 = vector.shape_cast %17 : vector<1x4x16xf32> to vector<4x16xf32>
    %c20 = arith.constant 20 : index
    %c0_20 = arith.constant 0 : index
    %19 = vector.load %arg7[%c20, %c0_20] : memref<36x16xf32, #tpu.memory_space<vmem>>, vector<4x16xf32>
    tpu.vector_store %arg7[%c20, %c0_20], %18 {strides = array<i32>} : memref<36x16xf32, #tpu.memory_space<vmem>>, vector<4x16xf32>,
    %c0_21 = arith.constant 0 : index
    %c0_22 = arith.constant 0 : index
    %c6 = arith.constant 6 : index
    %20 = vector.load %arg1[%c0_21, %c0_22, %c6] : memref<1x4x24xf32, #tpu.memory_space<vmem>>, vector<1x4x16xf32>
    %21 = vector.shape_cast %20 : vector<1x4x16xf32> to vector<4x16xf32>
    %c24 = arith.constant 24 : index
    %c0_23 = arith.constant 0 : index
    %22 = vector.load %arg7[%c24, %c0_23] : memref<36x16xf32, #tpu.memory_space<vmem>>, vector<4x16xf32>
    tpu.vector_store %arg7[%c24, %c0_23], %21 {strides = array<i32>} : memref<36x16xf32, #tpu.memory_space<vmem>>, vector<4x16xf32>,
    %c0_24 = arith.constant 0 : index
    %c0_25 = arith.constant 0 : index
    %c7 = arith.constant 7 : index
    %23 = vector.load %arg1[%c0_24, %c0_25, %c7] : memref<1x4x24xf32, #tpu.memory_space<vmem>>, vector<1x4x16xf32>
    %24 = vector.shape_cast %23 : vector<1x4x16xf32> to vector<4x16xf32>
    %c28 = arith.constant 28 : index
    %c0_26 = arith.constant 0 : index
    %25 = vector.load %arg7[%c28, %c0_26] : memref<36x16xf32, #tpu.memory_space<vmem>>, vector<4x16xf32>
    tpu.vector_store %arg7[%c28, %c0_26], %24 {strides = array<i32>} : memref<36x16xf32, #tpu.memory_space<vmem>>, vector<4x16xf32>,
    %c0_27 = arith.constant 0 : index
    %c0_28 = arith.constant 0 : index
    %c8_29 = arith.constant 8 : index
    %26 = vector.load %arg1[%c0_27, %c0_28, %c8_29] : memref<1x4x24xf32, #tpu.memory_space<vmem>>, vector<1x4x16xf32>
    %27 = vector.shape_cast %26 : vector<1x4x16xf32> to vector<4x16xf32>
    %c32 = arith.constant 32 : index
    %c0_30 = arith.constant 0 : index
    %28 = vector.load %arg7[%c32, %c0_30] : memref<36x16xf32, #tpu.memory_space<vmem>>, vector<4x16xf32>
    tpu.vector_store %arg7[%c32, %c0_30], %27 {strides = array<i32>} : memref<36x16xf32, #tpu.memory_space<vmem>>, vector<4x16xf32>,
    %c0_31 = arith.constant 0 : index
    %c0_32 = arith.constant 0 : index
    %29 = vector.load %arg7[%c0_31, %c0_32] : memref<36x16xf32, #tpu.memory_space<vmem>>, vector<36x16xf32>
    %c0_33 = arith.constant 0 : index
    %c0_34 = arith.constant 0 : index
    %30 = vector.load %arg2[%c0_33, %c0_34] : memref<8x36xf32, #tpu.memory_space<vmem>>, vector<8x36xf32>
    %cst_35 = arith.constant dense<0.000000e+00> : vector<8x16xf32>
    %31 = tpu.matmul %30, %29, %cst_35 {dimension_numbers = #tpu.dot_dimension_numbers<[1], [0], [0], [1], [0, 0, 1, 1], [], []>} : vector<8x36xf32>, vector<36x16xf32>, vector<8x16xf32> -> vector<8x16xf32>
    %c0_36 = arith.constant 0 : index
    %c0_37 = arith.constant 0 : index
    %32 = vector.load %arg3[%c0_36, %c0_37] : memref<8x1xf32, #tpu.memory_space<vmem>>, vector<8x1xf32>
    %33 = vector.broadcast %32 : vector<8x1xf32> to vector<8x16xf32>
    %34 = arith.addf %31, %33 : vector<8x16xf32>
    %cst_38 = arith.constant 0.000000e+00 : f32
    %35 = vector.broadcast %cst_38 : f32 to vector<8x16xf32>
    %36 = arith.cmpf ogt, %34, %35 : vector<8x16xf32>
    %37 = math.exp %34 : vector<8x16xf32>
    %cst_39 = arith.constant 1.000000e+00 : f32
    %38 = vector.broadcast %cst_39 : f32 to vector<8x16xf32>
    %39 = arith.subf %37, %38 : vector<8x16xf32>
    %40 = arith.select %36, %34, %39 : vector<8x16xi1>, vector<8x16xf32>
    %c0_40 = arith.constant 0 : index
    %c0_41 = arith.constant 0 : index
    %c0_42 = arith.constant 0 : index
    %41 = vector.load %arg4[%c0_40, %c0_41, %c0_42] : memref<1x8x16xf32, #tpu.memory_space<vmem>>, vector<1x8x16xf32>
    %42 = vector.shape_cast %41 : vector<1x8x16xf32> to vector<8x16xf32>
    %43 = vector.shape_cast %40 : vector<8x16xf32> to vector<1x8x16xf32>
    tpu.vector_store %arg4[%c0_40, %c0_41, %c0_42], %43 {strides = array<i32>} : memref<1x8x16xf32, #tpu.memory_space<vmem>>, vector<1x8x16xf32>,
    %cst_43 = arith.constant dense<0.000000e+00> : vector<8xf32>
    %44 = vector.multi_reduction <add>, %40, %cst_43 [1] : vector<8x16xf32> to vector<8xf32>
    %45 = vector.shape_cast %44 : vector<8xf32> to vector<8x1xf32>
    %46 = arith.addf %0, %45 : vector<8x1xf32>
    %47 = arith.mulf %40, %40 : vector<8x16xf32>
    %cst_44 = arith.constant dense<0.000000e+00> : vector<8xf32>
    %48 = vector.multi_reduction <add>, %47, %cst_44 [1] : vector<8x16xf32> to vector<8xf32>
    %49 = vector.shape_cast %48 : vector<8xf32> to vector<8x1xf32>
    %50 = arith.addf %1, %49 : vector<8x1xf32>
    %c0_45 = arith.constant 0 : index
    %c0_46 = arith.constant 0 : index
    %c0_47 = arith.constant 0 : index
    %51 = vector.load %arg5[%c0_45, %c0_46, %c0_47] : memref<1x8x1xf32, #tpu.memory_space<vmem>>, vector<1x8x1xf32>
    %52 = vector.shape_cast %51 : vector<1x8x1xf32> to vector<8x1xf32>
    %53 = vector.shape_cast %46 : vector<8x1xf32> to vector<1x8x1xf32>
    tpu.vector_store %arg5[%c0_45, %c0_46, %c0_47], %53 {strides = array<i32>} : memref<1x8x1xf32, #tpu.memory_space<vmem>>, vector<1x8x1xf32>,
    %c0_48 = arith.constant 0 : index
    %c0_49 = arith.constant 0 : index
    %c0_50 = arith.constant 0 : index
    %54 = vector.load %arg6[%c0_48, %c0_49, %c0_50] : memref<1x8x1xf32, #tpu.memory_space<vmem>>, vector<1x8x1xf32>
    %55 = vector.shape_cast %54 : vector<1x8x1xf32> to vector<8x1xf32>
    %56 = vector.shape_cast %50 : vector<8x1xf32> to vector<1x8x1xf32>
    tpu.vector_store %arg6[%c0_48, %c0_49, %c0_50], %56 {strides = array<i32>} : memref<1x8x1xf32, #tpu.memory_space<vmem>>, vector<1x8x1xf32>,
    return
  }
  func.func @transform_0(%arg0: i32) -> (i32, i32, i32) {
    %c0_i32 = arith.constant 0 : i32
    %c0_i32_0 = arith.constant 0 : i32
    %c0_i32_1 = arith.constant 0 : i32
    return %arg0, %c0_i32, %c0_i32_0 : i32, i32, i32
  }
  func.func @transform_1(%arg0: i32) -> (i32, i32) {
    %c0_i32 = arith.constant 0 : i32
    %c0_i32_0 = arith.constant 0 : i32
    %c0_i32_1 = arith.constant 0 : i32
    return %c0_i32, %c0_i32_0 : i32, i32
  }
  func.func @transform_2(%arg0: i32) -> (i32, i32) {
    %c0_i32 = arith.constant 0 : i32
    %c0_i32_0 = arith.constant 0 : i32
    %c0_i32_1 = arith.constant 0 : i32
    return %c0_i32, %c0_i32_0 : i32, i32
  }
  func.func @transform_3(%arg0: i32) -> (i32, i32, i32) {
    %c0_i32 = arith.constant 0 : i32
    %c0_i32_0 = arith.constant 0 : i32
    %c0_i32_1 = arith.constant 0 : i32
    return %arg0, %c0_i32, %c0_i32_0 : i32, i32, i32
  }
  func.func @transform_4(%arg0: i32) -> (i32, i32, i32) {
    %c0_i32 = arith.constant 0 : i32
    %c0_i32_0 = arith.constant 0 : i32
    %c0_i32_1 = arith.constant 0 : i32
    return %arg0, %c0_i32, %c0_i32_0 : i32, i32, i32
  }
  func.func @transform_5(%arg0: i32) -> (i32, i32, i32) {
    %c0_i32 = arith.constant 0 : i32
    %c0_i32_0 = arith.constant 0 : i32
    %c0_i32_1 = arith.constant 0 : i32
    return %arg0, %c0_i32, %c0_i32_0 : i32, i32, i32
  }
}

</mosaic_0001>

<llo_original>
// kernel: tpu_custom_call.1
$region0: #{tpu_custom_call.1}
  #allocation0 [shape = 'u32[]', space=smem, size = 0x4, offset = 0x4, fixed_abs, tag = 'smem constant byte address 0x4 - core index']
  #allocation1 [shape = 'u32[144,128]{1,0:T(1,128)}', space=vmem, size = 0x12000, scoped, tag = 'internal scratch']
  #allocation2 [shape = 'f32[36,16]{1,0:T(8,128)}', space=vmem, size = 0x5000, scoped, tag = 'scratch operand']
  %s0 = inlined_call_operand.vmem [shape: f32[2,4,24], index: 0, kind: input, shape index: {}]
  %s1 = inlined_call_operand.hbm [shape: f32[8,36], index: 1, kind: input, shape index: {}]
  %s2 = inlined_call_operand.vmem [shape: f32[8,1], index: 2, kind: input, shape index: {}]
  %s3 = inlined_call_operand.hbm [shape: f32[2,8,16], index: 3, kind: output, shape index: {0}]
  %s4 = inlined_call_operand.vmem [shape: f32[2,8,1], index: 4, kind: output, shape index: {1}]
  %s5 = inlined_call_operand.vmem [shape: f32[2,8,1], index: 5, kind: output, shape index: {2}]
  %6 = xla_tuple %s3, %s4, %s5
  %s7 = sld [smem:[#allocation0]]
  $region65: #{tpu_custom_call.1} parent=0
    _
  %s9 = ssub.s32 1, %s7
  %s10 = scalar_select 0, %s9, %s7
  $region1: #{tpu_custom_call.1} parent=0
    #allocation3 [shape = 'u8[4096]{0}', space=vmem, size = 0x1000, scoped, tag = 'input window, operand 1, single buffered']
    #allocation4 [shape = 's32[2]{0}', space=sflag, size = 0x8, scoped, tag = 'scoped memory for tpu_custom_call.1']
    #allocation5 [shape = 's32[2]{0}', space=sflag, size = 0x8, scoped, tag = 'scoped memory for tpu_custom_call.1']
    #allocation6 [shape = 'u8[8192]{0}', space=vmem, size = 0x2000, scoped, tag = 'output window, operand 0']
    %11 = vsyncpa [#allocation4], 0
    %12 = vsyncpa [#allocation5], 0
    %s13 = scalar_lea.sflag [#allocation5], 1
    %14 = vsyncpa %s13, 0
    loop: start=0, step=1, limit=4
    $region2: #{tpu_custom_call.1} parent=1 // loop_pre_header
      _
    $region3: #{tpu_custom_call.1} parent=1 // loop_header
      %s16 = sphi 0, %s20
      %p17 = scmp.ge.s32.totalorder %s16, 4
      %s26 = sphi 0, %s28
      %s29 = sphi 0, %s26
      %s30 = sphi 0, %s29
      %s46 = sphi 0, %s30
      %s50 = sphi 0, %s50
      %s52 = sphi 0, %s50
      %s53 = sphi 0, %s52
      %s67 = sphi 0, %s53
      %s71 = sphi 0, %s71
      %s73 = sphi 0, %s71
      %s74 = sphi 0, %s73
      %s88 = sphi 0, %s74
      %s94 = sphi 0, %s96
      %s97 = sphi 0, %s94
      %s98 = sphi 0, %s97
      %s114 = sphi 0, %s98
      %s120 = sphi 0, %s122
      %s123 = sphi 0, %s120
      %s124 = sphi 0, %s123
      %s140 = sphi 0, %s124
      %s146 = sphi 0, %s148
      %s149 = sphi 0, %s146
      %s150 = sphi 0, %s149
      %s166 = sphi 0, %s150
    $region4: #{tpu_custom_call.1} parent=1 // loop_header_branch
      %19 = sbr.rel (%p17) target = $region8
    $region5: #{tpu_custom_call.1} parent=1 // loop_body
      %s21 = ssub.s32 %s16, 1
      %s22 = ssub.s32 %s16, 2
      %s23 = sadd.s32 %s16, 1
      %s24 = ssub.s32 %s16, %s23
      %p25 = scmp.eq.s32.totalorder %s24, 0
      %s27 = sadd.s32 %s26, 1
      %s28 = scalar_select %p25, %s26, %s27
      %p31 = pneg %p25
      %p32 = scmp.eq.s32.totalorder %s16, 1
      %p33 = por %p31, %p32
      %p34 = scmp.ne.s32.totalorder %s26, %s29
      %p35 = scmp.eq.s32.totalorder %s16, 0
      %p36 = por %p34, %p35
      %p37 = scmp.ne.s32.totalorder %s26, %s29
      %p38 = scmp.eq.s32.totalorder %s21, 1
      %p39 = por %p37, %p38
      %p40 = scmp.ne.s32.totalorder %s29, %s30
      %p41 = scmp.eq.s32.totalorder %s21, 0
      %p42 = por %p40, %p41
      %p43 = scmp.ne.s32.totalorder %s29, %s30
      %p44 = scmp.eq.s32.totalorder %s22, 1
      %p45 = por %p43, %p44
      %p47 = scmp.ne.s32.totalorder %s30, %s46
      %p48 = scmp.eq.s32.totalorder %s22, 0
      %p49 = por %p47, %p48
      %s51 = sadd.s32 %s50, 1
      %p54 = scmp.eq.s32.totalorder %s16, 1
      %p55 = scmp.ne.s32.totalorder %s50, %s52
      %p56 = scmp.eq.s32.totalorder %s16, 0
      %p57 = por %p55, %p56
      %p58 = scmp.ne.s32.totalorder %s50, %s52
      %p59 = scmp.eq.s32.totalorder %s21, 1
      %p60 = por %p58, %p59
      %p61 = scmp.ne.s32.totalorder %s52, %s53
      %p62 = scmp.eq.s32.totalorder %s21, 0
      %p63 = por %p61, %p62
      %p64 = scmp.ne.s32.totalorder %s52, %s53
      %p65 = scmp.eq.s32.totalorder %s22, 1
      %p66 = por %p64, %p65
      %p68 = scmp.ne.s32.totalorder %s53, %s67
      %p69 = scmp.eq.s32.totalorder %s22, 0
      %p70 = por %p68, %p69
      %s72 = sadd.s32 %s71, 1
      %p75 = scmp.eq.s32.totalorder %s16, 1
      %p76 = scmp.ne.s32.totalorder %s71, %s73
      %p77 = scmp.eq.s32.totalorder %s16, 0
      %p78 = por %p76, %p77
      %p79 = scmp.ne.s32.totalorder %s71, %s73
      %p80 = scmp.eq.s32.totalorder %s21, 1
      %p81 = por %p79, %p80
      %p82 = scmp.ne.s32.totalorder %s73, %s74
      %p83 = scmp.eq.s32.totalorder %s21, 0
      %p84 = por %p82, %p83
      %p85 = scmp.ne.s32.totalorder %s73, %s74
      %p86 = scmp.eq.s32.totalorder %s22, 1
      %p87 = por %p85, %p86
      %p89 = scmp.ne.s32.totalorder %s74, %s88
      %p90 = scmp.eq.s32.totalorder %s22, 0
      %p91 = por %p89, %p90
      %s92 = ssub.s32 %s16, %s23
      %p93 = scmp.eq.s32.totalorder %s92, 0
      %s95 = sadd.s32 %s94, 1
      %s96 = scalar_select %p93, %s94, %s95
      %p99 = pneg %p93
      %p100 = scmp.eq.s32.totalorder %s16, 1
      %p101 = por %p99, %p100
      %p102 = scmp.ne.s32.totalorder %s94, %s97
      %p103 = scmp.eq.s32.totalorder %s16, 0
      %p104 = por %p102, %p103
      %p105 = scmp.ne.s32.totalorder %s94, %s97
      %p106 = scmp.eq.s32.totalorder %s21, 1
      %p107 = por %p105, %p106
      %p108 = scmp.ne.s32.totalorder %s97, %s98
      %p109 = scmp.eq.s32.totalorder %s21, 0
      %p110 = por %p108, %p109
      %p111 = scmp.ne.s32.totalorder %s97, %s98
      %p112 = scmp.eq.s32.totalorder %s22, 1
      %p113 = por %p111, %p112
      %p115 = scmp.ne.s32.totalorder %s98, %s114
      %p116 = scmp.eq.s32.totalorder %s22, 0
      %p117 = por %p115, %p116
      %s118 = ssub.s32 %s16, %s23
      %p119 = scmp.eq.s32.totalorder %s118, 0
      %s121 = sadd.s32 %s120, 1
      %s122 = scalar_select %p119, %s120, %s121
      %p125 = pneg %p119
      %p126 = scmp.eq.s32.totalorder %s16, 1
      %p127 = por %p125, %p126
      %p128 = scmp.ne.s32.totalorder %s120, %s123
      %p129 = scmp.eq.s32.totalorder %s16, 0
      %p130 = por %p128, %p129
      %p131 = scmp.ne.s32.totalorder %s120, %s123
      %p132 = scmp.eq.s32.totalorder %s21, 1
      %p133 = por %p131, %p132
      %p134 = scmp.ne.s32.totalorder %s123, %s124
      %p135 = scmp.eq.s32.totalorder %s21, 0
      %p136 = por %p134, %p135
      %p137 = scmp.ne.s32.totalorder %s123, %s124
      %p138 = scmp.eq.s32.totalorder %s22, 1
      %p139 = por %p137, %p138
      %p141 = scmp.ne.s32.totalorder %s124, %s140
      %p142 = scmp.eq.s32.totalorder %s22, 0
      %p143 = por %p141, %p142
      %s144 = ssub.s32 %s16, %s23
      %p145 = scmp.eq.s32.totalorder %s144, 0
      %s147 = sadd.s32 %s146, 1
      %s148 = scalar_select %p145, %s146, %s147
      %p151 = pneg %p145
      %p152 = scmp.eq.s32.totalorder %s16, 1
      %p153 = por %p151, %p152
      %p154 = scmp.ne.s32.totalorder %s146, %s149
      %p155 = scmp.eq.s32.totalorder %s16, 0
      %p156 = por %p154, %p155
      %p157 = scmp.ne.s32.totalorder %s146, %s149
      %p158 = scmp.eq.s32.totalorder %s21, 1
      %p159 = por %p157, %p158
      %p160 = scmp.ne.s32.totalorder %s149, %s150
      %p161 = scmp.eq.s32.totalorder %s21, 0
      %p162 = por %p160, %p161
      %p163 = scmp.ne.s32.totalorder %s149, %s150
      %p164 = scmp.eq.s32.totalorder %s22, 1
      %p165 = por %p163, %p164
      %p167 = scmp.ne.s32.totalorder %s150, %s166
      %p168 = scmp.eq.s32.totalorder %s22, 0
      %p169 = por %p167, %p168
      %p170 = scmp.le.s32.totalorder 1, %s16
      %p171 = scmp.lt.s32.totalorder %s16, 3
      %p172 = pnand %p170, %p171
      %p173 = pneg %p172
      // Predicated region
      $region9: #{tpu_custom_call.1} parent=5 // pred_check
        _
      $region10: #{tpu_custom_call.1} parent=5 // pred_check_branch
        %175 = sbr.rel (%p172) target = $region12
      $region11: #{tpu_custom_call.1} parent=5 // pred_region
        %s176 = ssub.s32 %s16, 1
        // Predicated region
        $region13: #{tpu_custom_call.1} parent=11 // pred_check
          %p177 = pneg %p63
        $region14: #{tpu_custom_call.1} parent=11 // pred_check_branch
          %179 = sbr.rel (%p177) target = $region16
        $region15: #{tpu_custom_call.1} parent=11 // pred_region
          %s181 = ssub.s32 128, 128
          %182 = vsyncadd [#allocation4], %s181
          %s184 = sshll.u32 [#allocation3], 4
          %s185 = int_to_ptr.vmem [resolvable:$true] %s184
          %187 = dma.hbm_to_vmem [thread:$0]  %s1, 128, %s185, [#allocation4]
        $region16: #{tpu_custom_call.1} parent=11 // pred_fallthru
          _
        // Predicated region
        $region17: #{tpu_custom_call.1} parent=11 // pred_check
          %p188 = pneg %p84
        $region18: #{tpu_custom_call.1} parent=11 // pred_check_branch
          %190 = sbr.rel (%p188) target = $region20
        $region19: #{tpu_custom_call.1} parent=11 // pred_region
          _
        $region20: #{tpu_custom_call.1} parent=11 // pred_fallthru
          _
      $region12: #{tpu_custom_call.1} parent=5 // pred_fallthru
        _
      %p191 = scmp.lt.s32.totalorder %s16, 2
      // Predicated region
      $region21: #{tpu_custom_call.1} parent=5 // pred_check
        %p192 = pneg %p191
      $region22: #{tpu_custom_call.1} parent=5 // pred_check_branch
        %194 = sbr.rel (%p192) target = $region24
      $region23: #{tpu_custom_call.1} parent=5 // pred_region
        // Predicated region
        $region25: #{tpu_custom_call.1} parent=23 // pred_check
          %p195 = pneg %p36
        $region26: #{tpu_custom_call.1} parent=23 // pred_check_branch
          %197 = sbr.rel (%p195) target = $region28
        $region27: #{tpu_custom_call.1} parent=23 // pred_region
          %p198 = scmp.lt.s32.totalorder %s16, 1
          %s199 = scalar_select %p198, %s16, 1
          %s200 = smul.addr %s199, 4
          %s201 = scalar_lea.vmem %s0, %s200
        $region28: #{tpu_custom_call.1} parent=23 // pred_fallthru
          _
      $region24: #{tpu_custom_call.1} parent=5 // pred_fallthru
        _
      %p202 = scmp.le.s32.totalorder 1, %s16
      %p203 = scmp.lt.s32.totalorder %s16, 3
      %p204 = pnand %p202, %p203
      %p205 = pneg %p204
      // Predicated region
      $region29: #{tpu_custom_call.1} parent=5 // pred_check
        _
      $region30: #{tpu_custom_call.1} parent=5 // pred_check_branch
        %207 = sbr.rel (%p204) target = $region32
      $region31: #{tpu_custom_call.1} parent=5 // pred_region
        %s208 = ssub.s32 %s16, 1
        // Predicated region
        $region33: #{tpu_custom_call.1} parent=31 // pred_check
          %p209 = pneg %p63
        $region34: #{tpu_custom_call.1} parent=31 // pred_check_branch
          %211 = sbr.rel (%p209) target = $region36
        $region35: #{tpu_custom_call.1} parent=31 // pred_region
          %212 = dma.done [#allocation4], 128
        $region36: #{tpu_custom_call.1} parent=31 // pred_fallthru
          _
        %p213 = scmp.lt.s32.totalorder %s21, 1
        %s214 = scalar_select %p213, %s21, 1
        %s215 = smul.addr %s214, 4
        %s216 = scalar_lea.vmem %s0, %s215
        %p217 = pneg %p42
        %p218 = pneg %p39
        %p219 = pneg %p63
        %p220 = pneg %p60
        %p221 = pneg %p84
        %p222 = pneg %p81
        %p223 = pneg %p110
        %p224 = pneg %p107
        %s225 = sand.u32 %s97, 1
        %s226 = scalar_lea.sflag [#allocation5], %s225
        %s227 = sand.u32 %s97, 1
        %s228 = smul.addr %s227, 8
        %s229 = scalar_lea.vmem [#allocation6], %s228
        %p230 = pneg %p136
        %p231 = pneg %p133
        %p232 = scmp.lt.s32.totalorder %s21, 1
        %s233 = scalar_select %p232, %s21, 1
        %s234 = smul.addr %s233, 8
        %s235 = scalar_lea.vmem %s4, %s234
        %p236 = pneg %p162
        %p237 = pneg %p159
        %p238 = scmp.lt.s32.totalorder %s21, 1
        %s239 = scalar_select %p238, %s21, 1
        %s240 = smul.addr %s239, 8
        %s241 = scalar_lea.vmem %s5, %s240
        %p242 = scmp.lt.s32.totalorder %s21, 1
        %s243 = scalar_select %p242, %s21, 1
        %s244 = smul.addr %s243, 4
        %s245 = scalar_lea.vmem %s0, %s244
        %p246 = scmp.lt.s32.totalorder %s21, 1
        %s247 = scalar_select %p246, %s21, 1
        %s248 = smul.addr %s247, 8
        %s249 = scalar_lea.vmem %s4, %s248
        %p250 = scmp.lt.s32.totalorder %s21, 1
        %s251 = scalar_select %p250, %s21, 1
        %s252 = smul.addr %s251, 8
        %s253 = scalar_lea.vmem %s5, %s252
        %v254 = vld [vmem:[%s245] sm:$0xf]
        %vm255 = vcmask 125952
        %256 = vst.msk [vmem:[#allocation2] sm:$0xf] %vm255, %v254
        %v257 = vld [vmem:[%s245] sm:$0xf]
        %259 = vrot.lane.b32.xlu0 %v257, 127
        %v260 = vpop.permute.xlu0 %259
        %262 = vst.msk [vmem:[#allocation2 + $0x4] sm:$0xf] %vm255, %v260
        %v263 = vld [vmem:[%s245] sm:$0xf]
        %265 = vrot.lane.b32.xlu0 %v263, 126
        %v266 = vpop.permute.xlu0 %265
        %268 = vst.msk [vmem:[#allocation2 + $0x8] sm:$0xf] %vm255, %v266
        %v269 = vld [vmem:[%s245] sm:$0xf]
        %271 = vrot.lane.b32.xlu0 %v269, 125
        %v272 = vpop.permute.xlu0 %271
        %274 = vst.msk [vmem:[#allocation2 + $0xc] sm:$0xf] %vm255, %v272
        %v275 = vld [vmem:[%s245] sm:$0xf]
        %277 = vrot.lane.b32.xlu0 %v275, 124
        %v278 = vpop.permute.xlu0 %277
        %280 = vst.msk [vmem:[#allocation2 + $0x10] sm:$0xf] %vm255, %v278
        %v281 = vld [vmem:[%s245] sm:$0xf]
        %283 = vrot.lane.b32.xlu0 %v281, 123
        %v284 = vpop.permute.xlu0 %283
        %286 = vst.msk [vmem:[#allocation2 + $0x14] sm:$0xf] %vm255, %v284
        %v287 = vld [vmem:[%s245] sm:$0xf]
        %289 = vrot.lane.b32.xlu0 %v287, 122
        %v290 = vpop.permute.xlu0 %289
        %292 = vst.msk [vmem:[#allocation2 + $0x18] sm:$0xf] %vm255, %v290
        %v293 = vld [vmem:[%s245] sm:$0xf]
        %295 = vrot.lane.b32.xlu0 %v293, 121
        %v296 = vpop.permute.xlu0 %295
        %298 = vst.msk [vmem:[#allocation2 + $0x1c] sm:$0xf] %vm255, %v296
        %v299 = vld [vmem:[%s245] sm:$0xf]
        %301 = vrot.lane.b32.xlu0 %v299, 120
        %v302 = vpop.permute.xlu0 %301
        %304 = vst.msk [vmem:[#allocation2 + $0x20] sm:$0xf] %vm255, %v302
        %v305 = vld [vmem:[#allocation2] sm:$0xff]
        %v306 = vld [vmem:[#allocation2 + $0x8] sm:$0xff]
        %v307 = vld [vmem:[#allocation2 + $0x10] sm:$0xff]
        %v308 = vld [vmem:[#allocation2 + $0x18] sm:$0xff]
        %v309 = vld [vmem:[#allocation2 + $0x20] sm:$0xf]
        %v310 = vld [vmem:[#allocation3] sm:$0xff]
        %v311 = vld [vmem:[%s2] sm:$0xff]
        %313 = vset.pattern.permute.xlu0 0
        %314 = vperm.xlu0 %313, %v311
        %v315 = vpop.permute.xlu0 %314
        %vm317 = vcmask 293888
        %v319 = vsel %vm317, %v310, 0
        %vm321 = vcmask 1043456
        %v323 = vsel %vm321, %v309, 0
        %325 = vmatprep.subr.mxu0 0.0
        %326 = vmatpush1.msra.mxu0 %v305
        %327 = vmatprep.subr.mxu0 0.0
        %328 = vmatpush1.msra.mxu0 %v306
        %329 = vmatprep.subr.mxu0 0.0
        %330 = vmatpush1.msra.mxu0 %v307
        %331 = vmatprep.subr.mxu0 0.0
        %332 = vmatpush1.msra.mxu0 %v308
        %333 = vmatprep.subr.mxu0 0.0
        %334 = vmatpush1.msra.mxu0 %v323
        %335 = vmatprep.subr.mxu0 0.0
        %336 = vmatpush1.msra.mxu0 0.0
        %337 = vmatprep.subr.mxu0 0.0
        %338 = vmatpush1.msra.mxu0 0.0
        %339 = vmatprep.subr.mxu0 0.0
        %340 = vmatpush1.msra.mxu0 0.0
        %341 = vmatprep.subr.mxu0 0.0
        %342 = vmatpush1.msra.mxu0 0.0
        %343 = vmatprep.subr.mxu0 0.0
        %344 = vmatpush1.msra.mxu0 0.0
        %345 = vmatprep.subr.mxu0 0.0
        %346 = vmatpush1.msra.mxu0 0.0
        %347 = vmatprep.subr.mxu0 0.0
        %348 = vmatpush1.msra.mxu0 0.0
        %349 = vmatprep.subr.mxu0 0.0
        %350 = vmatpush1.msra.mxu0 0.0
        %351 = vmatprep.subr.mxu0 0.0
        %352 = vmatpush1.msra.mxu0 0.0
        %353 = vmatprep.subr.mxu0 0.0
        %354 = vmatpush1.msra.mxu0 0.0
        %355 = vmatprep.subr.mxu0 0.0
        %356 = vmatpush1.msra.mxu0 0.0
        %357 = vmatprep.subr.mxu0 0.0
        %358 = vmatpush1.msra.mxu0 0.0
        %359 = vmatprep.subr.mxu0 0.0
        %360 = vmatpush1.msra.mxu0 0.0
        %361 = vmatprep.subr.mxu0 0.0
        %362 = vmatpush1.msra.mxu0 0.0
        %363 = vmatprep.subr.mxu0 0.0
        %364 = vmatpush1.msra.mxu0 0.0
        %365 = vmatprep.subr.mxu0 0.0
        %366 = vmatpush1.msra.mxu0 0.0
        %367 = vmatprep.subr.mxu0 0.0
        %368 = vmatpush1.msra.mxu0 0.0
        %369 = vmatprep.subr.mxu0 0.0
        %370 = vmatpush1.msra.mxu0 0.0
        %371 = vmatprep.subr.mxu0 0.0
        %372 = vmatpush1.msra.mxu0 0.0
        %373 = vmatprep.subr.mxu0 0.0
        %374 = vmatpush1.msra.mxu0 0.0
        %375 = vmatprep.subr.mxu0 0.0
        %376 = vmatpush1.msra.mxu0 0.0
        %377 = vmatprep.subr.mxu0 0.0
        %378 = vmatpush1.msra.mxu0 0.0
        %379 = vmatprep.subr.mxu0 0.0
        %380 = vmatpush1.msra.mxu0 0.0
        %381 = vmatprep.subr.mxu0 0.0
        %382 = vmatpush1.msra.mxu0 0.0
        %383 = vmatprep.subr.mxu0 0.0
        %384 = vmatpush1.msra.mxu0 0.0
        %385 = vmatprep.subr.mxu0 0.0
        %386 = vmatpush1.msra.mxu0 0.0
        %387 = vmatprep.subr.mxu0 0.0
        %388 = vmatpush1.msra.mxu0 0.0
        %389 = vmatprep.mubr.f32.mxu0 0.0
        %390 = vmatmul.mubr.f32.gmra.mrb[0].mxu0 %v319
        %v391 = vpop.f32.mrb[0].mxu0
        %v392 = vadd.f32 %v315, %v391
        %v393 = vpop.f32.mrb[0].mxu0
        %394 = vdwg.mxu0
        %vm395 = vcmp.gt.f32.partialorder %v392, 0.0
        %v396 = vmul.f32 %v392, 1.442695
        %v397 = vpow.pop %v396
        %v398 = vsub.f32 %v397, 1.0
        %v399 = vsel %vm395, %v392, %v398
        %vm400 = vcmask 130048
        %401 = vst.msk [vmem:[%s229] sm:$0xff] %vm400, %v399
        %v402 = vsel %vm400, %v399, 0.0
        %403 = vadd.xlane.f32.xlu0 %v402
        %v404 = vpop.xlane.xlu0 %403
        %v405 = vadd.f32 %v404, 0.0
        %v406 = vmul.f32 %v399, %v399
        %v407 = vsel %vm400, %v406, 0.0
        %408 = vadd.xlane.f32.xlu0 %v407
        %v409 = vpop.xlane.xlu0 %408
        %v410 = vadd.f32 %v409, 0.0
        %vm411 = vcmask 7168
        %412 = vst.msk [vmem:[%s249] sm:$0xff] %vm411, %v405
        %413 = vst.msk [vmem:[%s253] sm:$0xff] %vm411, %v410
        %s414 = sand.u32 %s97, 1
        %s415 = scalar_lea.sflag [#allocation5], %s414
        %s416 = sand.u32 %s97, 1
        %s417 = smul.addr %s416, 8
        %s418 = scalar_lea.vmem [#allocation6], %s417
        %p419 = scmp.lt.s32.totalorder %s21, 1
        %s420 = scalar_select %p419, %s21, 1
        %s421 = smul.addr %s420, 8
        %s422 = scalar_lea.vmem %s4, %s421
        %p423 = scmp.lt.s32.totalorder %s21, 1
        %s424 = scalar_select %p423, %s21, 1
        %s425 = smul.addr %s424, 8
        %s426 = scalar_lea.vmem %s5, %s425
        // Predicated region
        $region37: #{tpu_custom_call.1} parent=31 // pred_check
          %p427 = pneg %p107
        $region38: #{tpu_custom_call.1} parent=31 // pred_check_branch
          %429 = sbr.rel (%p427) target = $region40
        $region39: #{tpu_custom_call.1} parent=31 // pred_region
          %s431 = ssub.s32 128, 128
          %432 = vsyncadd %s415, %s431
          %s433 = smul.addr %s21, 128
          %s434 = scalar_lea.hbm %s3, %s433
          %s436 = sshll.u32 %s418, 4
          %s437 = int_to_ptr.vmem [resolvable:$true] %s436
          %439 = dma.vmem_to_hbm [thread:$0]  %s437, 128, %s434, %s415
        $region40: #{tpu_custom_call.1} parent=31 // pred_fallthru
          _
        // Predicated region
        $region41: #{tpu_custom_call.1} parent=31 // pred_check
          %p440 = pneg %p133
        $region42: #{tpu_custom_call.1} parent=31 // pred_check_branch
          %442 = sbr.rel (%p440) target = $region44
        $region43: #{tpu_custom_call.1} parent=31 // pred_region
          _
        $region44: #{tpu_custom_call.1} parent=31 // pred_fallthru
          _
        // Predicated region
        $region45: #{tpu_custom_call.1} parent=31 // pred_check
          %p443 = pneg %p159
        $region46: #{tpu_custom_call.1} parent=31 // pred_check_branch
          %445 = sbr.rel (%p443) target = $region48
        $region47: #{tpu_custom_call.1} parent=31 // pred_region
          _
        $region48: #{tpu_custom_call.1} parent=31 // pred_fallthru
          _
      $region32: #{tpu_custom_call.1} parent=5 // pred_fallthru
        _
      %p446 = scmp.le.s32.totalorder 2, %s16
      // Predicated region
      $region49: #{tpu_custom_call.1} parent=5 // pred_check
        %p447 = pneg %p446
      $region50: #{tpu_custom_call.1} parent=5 // pred_check_branch
        %449 = sbr.rel (%p447) target = $region52
      $region51: #{tpu_custom_call.1} parent=5 // pred_region
        %s450 = ssub.s32 %s16, 2
        // Predicated region
        $region53: #{tpu_custom_call.1} parent=51 // pred_check
          %p451 = pneg %p113
        $region54: #{tpu_custom_call.1} parent=51 // pred_check_branch
          %453 = sbr.rel (%p451) target = $region56
        $region55: #{tpu_custom_call.1} parent=51 // pred_region
          %s454 = sand.u32 %s98, 1
          %s455 = scalar_lea.sflag [#allocation5], %s454
          %s456 = sand.u32 %s98, 1
          %s457 = smul.addr %s456, 8
          %s458 = scalar_lea.vmem [#allocation6], %s457
          %459 = dma.done %s455, 128
        $region56: #{tpu_custom_call.1} parent=51 // pred_fallthru
          _
        // Predicated region
        $region57: #{tpu_custom_call.1} parent=51 // pred_check
          %p460 = pneg %p139
        $region58: #{tpu_custom_call.1} parent=51 // pred_check_branch
          %462 = sbr.rel (%p460) target = $region60
        $region59: #{tpu_custom_call.1} parent=51 // pred_region
          %p463 = scmp.lt.s32.totalorder %s22, 1
          %s464 = scalar_select %p463, %s22, 1
          %s465 = smul.addr %s464, 8
          %s466 = scalar_lea.vmem %s4, %s465
        $region60: #{tpu_custom_call.1} parent=51 // pred_fallthru
          _
        // Predicated region
        $region61: #{tpu_custom_call.1} parent=51 // pred_check
          %p467 = pneg %p165
        $region62: #{tpu_custom_call.1} parent=51 // pred_check_branch
          %469 = sbr.rel (%p467) target = $region64
        $region63: #{tpu_custom_call.1} parent=51 // pred_region
          %p470 = scmp.lt.s32.totalorder %s22, 1
          %s471 = scalar_select %p470, %s22, 1
          %s472 = smul.addr %s471, 8
          %s473 = scalar_lea.vmem %s5, %s472
        $region64: #{tpu_custom_call.1} parent=51 // pred_fallthru
          _
      $region52: #{tpu_custom_call.1} parent=5 // pred_fallthru
        _
    $region6: #{tpu_custom_call.1} parent=1 // loop_footer
      %s20 = sadd.s32 1, %s16
    $region7: #{tpu_custom_call.1} parent=1 // loop_footer_branch
      %15 = sbr.rel target = $region3
    $region8: #{tpu_custom_call.1} parent=1 // loop_exit
      _
    %474 = vsyncpa [#allocation4], 1
    %s475 = scalar_lea.sflag [#allocation4], 1
    %476 = vsyncpa %s475, 1
    %477 = vsyncpa [#allocation5], 1
    %s478 = scalar_lea.sflag [#allocation5], 1
    %479 = vsyncpa %s478, 1

</llo_original>
